<compile_context>
chip_gen: v6e
topology: v6e:2x2x1
jax: 0.10.0
libtpu: 0.0.40
codegen_flags: <defaults>
</compile_context>

<pallas_src>
import functools

import jax
import jax.numpy as jnp
from jax.experimental import pallas as pl
from jax.experimental.pallas import tpu as pltpu


def _round_up(x, m):
    return ((x + m - 1) // m) * m


def _pick_tile(dim, cap, gran):
    """Largest multiple of `gran` that divides `dim` and is <= max(cap, gran).

    `dim` must already be a multiple of `gran`, so this terminates at `gran`
    in the worst case and never introduces padding beyond granularity.
    """
    cap = max(cap, gran)
    t = min((cap // gran) * gran, dim)
    while dim % t:
        t -= gran
    return t


def _linear_kernel(x_ref, w_ref, b_ref, o_ref, acc_ref, *, compute_dtype):
    """One (tm, tn) output tile; K-reduction runs over grid axis 2."""
    k = pl.program_id(2)

    @pl.when(k == 0)
    def _init():
        acc_ref[...] = jnp.zeros_like(acc_ref)

    # Cast the streamed tiles to the MXU fast-path dtype in VMEM (no extra HBM
    # traffic), accumulate in f32.
    acc_ref[...] += jnp.dot(
        x_ref[...].astype(compute_dtype),
        w_ref[...].astype(compute_dtype),
        preferred_element_type=jnp.float32,
    )

    @pl.when(k == pl.num_programs(2) - 1)
    def _finalize():
        # Bias added exactly once, in f32, then cast to the output dtype.
        o_ref[...] = (
            acc_ref[...] + b_ref[...].astype(jnp.float32)
        ).astype(o_ref.dtype)


def classifier_forward(
    x,
    w,
    b,
    *,
    tm=512,
    tn=512,
    tk=1024,
    compute_dtype=jnp.bfloat16,
    out_dtype=None,
):
    """Pallas equivalent of Classifier.forward: returns (logits, {}).

    x: (batch, feat_dim)        feature vectors
    w: (feat_dim, num_classes)  Linear weight stored transposed (in, out)
    b: (num_classes,)           bias
    """
    batch, feat_dim = x.shape
    feat_dim_w, num_classes = w.shape
    assert feat_dim == feat_dim_w
    out_dtype = x.dtype if out_dtype is None else out_dtype

    x_bytes = jnp.dtype(x.dtype).itemsize
    w_bytes = jnp.dtype(w.dtype).itemsize
    o_bytes = jnp.dtype(out_dtype).itemsize

    # Sublane granularity for the streamed x tiles (f32 -> 8, bf16 -> 16, ...).
    sub = max(8, 32 // x_bytes)

    # Pad only to lane/sublane granularity (zeros along K don't change the
    # matmul; extra M/N rows/cols are sliced off below).
    M = _round_up(batch, sub)
    K = _round_up(feat_dim, 128)
    N = _round_up(num_classes, 128)

    # Tile sizes: largest ladder values that exactly divide the padded dims.
    tm_ = _pick_tile(M, tm, sub)
    tn_ = _pick_tile(N, tn, 128)
    tk_ = _pick_tile(K, tk, 128)

    # v7x has 2 TensorCores; make sure at least one "parallel" axis has >= 2
    # tiles so the grid can shard across them (when the problem allows it).
    if M // tm_ == 1 and N // tn_ == 1:
        if N >= 2 * 128:
            tn_ = _pick_tile(N, N // 2, 128)
        elif M >= 2 * sub:
            tm_ = _pick_tile(M, M // 2, sub)

    # Zero-pad (no dtype cast -> no extra HBM round trip for the weight).
    xp = jnp.pad(x, ((0, M - batch), (0, K - feat_dim)))
    wp = jnp.pad(w, ((0, K - feat_dim), (0, N - num_classes)))
    bp = jnp.pad(b.astype(jnp.float32), ((0, N - num_classes),)).reshape(1, N)

    grid_m, grid_n, grid_k = M // tm_, N // tn_, K // tk_

    # Double-buffered VMEM footprint (inputs streamed in native dtype) plus
    # accumulator; request with headroom but stay under v7x's 64 MiB physical.
    footprint = (
        2 * (tm_ * tk_ * x_bytes + tk_ * tn_ * w_bytes)  # x, w (double-buffered)
        + 2 * tm_ * tn_ * o_bytes                        # output tiles
        + tm_ * tn_ * 4                                  # f32 accumulator
        + 2 * tn_ * 4                                    # bias
    )
    vmem_limit = int(min(max(footprint * 3 // 2, 16 << 20), 48 << 20))

    # HBM traffic including re-streaming across the (i, j) grid.
    cost = pl.CostEstimate(
        flops=2 * M * N * K,
        transcendentals=0,
        bytes_accessed=(
            M * K * x_bytes * grid_n
            + K * N * w_bytes * grid_m
            + M * N * o_bytes
            + N * 4
        ),
    )

    kernel = functools.partial(_linear_kernel, compute_dtype=compute_dtype)

    padded_logits = pl.pallas_call(
        kernel,
        out_shape=jax.ShapeDtypeStruct((M, N), out_dtype),
        grid_spec=pltpu.PrefetchScalarGridSpec(
            num_scalar_prefetch=0,
            grid=(grid_m, grid_n, grid_k),
            in_specs=[
                pl.BlockSpec((tm_, tk_), lambda i, j, k: (i, k)),
                pl.BlockSpec((tk_, tn_), lambda i, j, k: (k, j)),
                # Bias block index depends only on j -> re-DMA'd only when the
                # output column tile changes.
                pl.BlockSpec((1, tn_), lambda i, j, k: (0, j)),
            ],
            out_specs=pl.BlockSpec((tm_, tn_), lambda i, j, k: (i, j)),
            scratch_shapes=[pltpu.VMEM((tm_, tn_), jnp.float32)],
        ),
        compiler_params=pltpu.CompilerParams(
            dimension_semantics=("parallel", "parallel", "arbitrary"),
            vmem_limit_bytes=vmem_limit,
        ),
        cost_estimate=cost,
    )(xp, wp, bp)

    logits = padded_logits[:batch, :num_classes]
    return logits, {}


if __name__ == "__main__":
    # Small shapes consistent with a classifier head.
    batch, feat_dim, num_classes = 2, 32, 8

    key = jax.random.PRNGKey(0)
    kx, kw, kb = jax.random.split(key, 3)

    x = jax.random.normal(kx, (batch, feat_dim), dtype=jnp.float32)
    # Linear params: weight stored transposed as (in, out).
    w = (
        jax.random.normal(kw, (feat_dim, num_classes), dtype=jnp.float32)
        * (1.0 / jnp.sqrt(feat_dim))
    )
    b = jax.random.normal(kb, (num_classes,), dtype=jnp.float32) * 0.01

    logits, extras = classifier_forward(x, w, b)
    logits = jax.block_until_ready(logits)

    # Reference check (mirror the kernel's bf16 operands / f32 accumulation).
    x_bf = x.astype(jnp.bfloat16).astype(jnp.float32)
    w_bf = w.astype(jnp.bfloat16).astype(jnp.float32)
    ref = x_bf @ w_bf + b

    assert logits.shape == (batch, num_classes)
    assert logits.dtype == x.dtype
    assert extras == {}
    assert jnp.allclose(logits, ref, atol=2e-2, rtol=2e-2)

    print("KERNEL_OK")
</pallas_src>

<mosaic_0001>
module attributes {stable_mosaic.version = 11 : i64} {
  func.func @_linear_kernel(%arg0: i32, %arg1: i32, %arg2: i32, %arg3: memref<8x128xf32, #tpu.memory_space<vmem>>, %arg4: memref<128x128xf32, #tpu.memory_space<vmem>>, %arg5: memref<1x128xf32, #tpu.memory_space<vmem>>, %arg6: memref<8x128xf32, #tpu.memory_space<vmem>>, %arg7: memref<8x128xf32, #tpu.memory_space<vmem>>) attributes {dimension_semantics = [#tpu.dimension_semantics<parallel>, #tpu.dimension_semantics<parallel>, #tpu.dimension_semantics<arbitrary>], iteration_bounds = array<i64: 1, 1, 1>, scalar_prefetch = 0 : i64, scratch_operands = 1 : i64, tpu.core_type = #tpu.core_type<tc>, window_params = [{transform_indices = @transform_0, window_bounds = array<i64: 8, 128>}, {transform_indices = @transform_1, window_bounds = array<i64: 128, 128>}, {transform_indices = @transform_2, window_bounds = array<i64: 1, 128>}, {transform_indices = @transform_3, window_bounds = array<i64: 8, 128>}]} {
    %c0_i32 = arith.constant 0 : i32
    %0 = arith.cmpi eq, %arg2, %c0_i32 : i32
    %1 = arith.extui %0 : i1 to i32
    %c0_i32_0 = arith.constant 0 : i32
    %2 = arith.cmpi ne, %1, %c0_i32_0 : i32
    scf.if %2 {
      %cst_10 = arith.constant 0.000000e+00 : f32
      %14 = vector.broadcast %cst_10 : f32 to vector<8x128xf32>
      %c0_11 = arith.constant 0 : index
      %c0_12 = arith.constant 0 : index
      %15 = vector.load %arg7[%c0_11, %c0_12] : memref<8x128xf32, #tpu.memory_space<vmem>>, vector<8x128xf32>
      tpu.vector_store %arg7[%c0_11, %c0_12], %14 {strides = array<i32>} : memref<8x128xf32, #tpu.memory_space<vmem>>, vector<8x128xf32>,
    } else {
    }
    %c0 = arith.constant 0 : index
    %c0_1 = arith.constant 0 : index
    %3 = vector.load %arg7[%c0, %c0_1] : memref<8x128xf32, #tpu.memory_space<vmem>>, vector<8x128xf32>
    %c0_2 = arith.constant 0 : index
    %c0_3 = arith.constant 0 : index
    %4 = vector.load %arg3[%c0_2, %c0_3] : memref<8x128xf32, #tpu.memory_space<vmem>>, vector<8x128xf32>
    %5 = arith.truncf %4 : vector<8x128xf32> to vector<8x128xbf16>
    %c0_4 = arith.constant 0 : index
    %c0_5 = arith.constant 0 : index
    %6 = vector.load %arg4[%c0_4, %c0_5] : memref<128x128xf32, #tpu.memory_space<vmem>>, vector<128x128xf32>
    %7 = arith.truncf %6 : vector<128x128xf32> to vector<128x128xbf16>
    %cst = arith.constant dense<0.000000e+00> : vector<8x128xf32>
    %8 = tpu.matmul %5, %7, %cst {dimension_numbers = #tpu.dot_dimension_numbers<[1], [0], [0], [1], [0, 0, 1, 1], [], []>} : vector<8x128xbf16>, vector<128x128xbf16>, vector<8x128xf32> -> vector<8x128xf32>
    %9 = arith.addf %3, %8 : vector<8x128xf32>
    %c0_6 = arith.constant 0 : index
    %c0_7 = arith.constant 0 : index
    %10 = vector.load %arg7[%c0_6, %c0_7] : memref<8x128xf32, #tpu.memory_space<vmem>>, vector<8x128xf32>
    tpu.vector_store %arg7[%c0_6, %c0_7], %9 {strides = array<i32>} : memref<8x128xf32, #tpu.memory_space<vmem>>, vector<8x128xf32>,
    %c0_i32_8 = arith.constant 0 : i32
    %11 = arith.cmpi eq, %arg2, %c0_i32_8 : i32
    %12 = arith.extui %11 : i1 to i32
    %c0_i32_9 = arith.constant 0 : i32
    %13 = arith.cmpi ne, %12, %c0_i32_9 : i32
    scf.if %13 {
      %c0_10 = arith.constant 0 : index
      %c0_11 = arith.constant 0 : index
      %14 = vector.load %arg7[%c0_10, %c0_11] : memref<8x128xf32, #tpu.memory_space<vmem>>, vector<8x128xf32>
      %c0_12 = arith.constant 0 : index
      %c0_13 = arith.constant 0 : index
      %15 = vector.load %arg5[%c0_12, %c0_13] : memref<1x128xf32, #tpu.memory_space<vmem>>, vector<1x128xf32>
      %16 = vector.broadcast %15 : vector<1x128xf32> to vector<8x128xf32>
      %17 = arith.addf %14, %16 : vector<8x128xf32>
      %c0_14 = arith.constant 0 : index
      %c0_15 = arith.constant 0 : index
      %18 = vector.load %arg6[%c0_14, %c0_15] : memref<8x128xf32, #tpu.memory_space<vmem>>, vector<8x128xf32>
      tpu.vector_store %arg6[%c0_14, %c0_15], %17 {strides = array<i32>} : memref<8x128xf32, #tpu.memory_space<vmem>>, vector<8x128xf32>,
    } else {
    }
    return
  }
  func.func @transform_0(%arg0: i32, %arg1: i32, %arg2: i32) -> (i32, i32) {
    %c0_i32 = arith.constant 0 : i32
    return %arg0, %arg2 : i32, i32
  }
  func.func @transform_1(%arg0: i32, %arg1: i32, %arg2: i32) -> (i32, i32) {
    %c0_i32 = arith.constant 0 : i32
    return %arg2, %arg1 : i32, i32
  }
  func.func @transform_2(%arg0: i32, %arg1: i32, %arg2: i32) -> (i32, i32) {
    %c0_i32 = arith.constant 0 : i32
    %c0_i32_0 = arith.constant 0 : i32
    return %c0_i32, %arg1 : i32, i32
  }
  func.func @transform_3(%arg0: i32, %arg1: i32, %arg2: i32) -> (i32, i32) {
    %c0_i32 = arith.constant 0 : i32
    return %arg0, %arg1 : i32, i32
  }
}

</mosaic_0001>

<llo_original>
// kernel: tpu_custom_call.1
$region0: #{tpu_custom_call.1}
  #allocation0 [shape = 'u32[]', space=smem, size = 0x4, offset = 0x4, fixed_abs, tag = 'smem constant byte address 0x4 - core index']
  #allocation1 [shape = 'u32[144,128]{1,0:T(1,128)}', space=vmem, size = 0x12000, scoped, tag = 'internal scratch']
  #allocation2 [shape = 'f32[8,128]{1,0:T(8,128)}', space=vmem, size = 0x1000, scoped, tag = 'scratch operand']
  %s0 = inlined_call_operand.hbm [shape: f32[8,128], index: 0, kind: input, shape index: {}]
  %s1 = inlined_call_operand.hbm [shape: f32[128,128], index: 1, kind: input, shape index: {}]
  %s2 = inlined_call_operand.vmem [shape: f32[1,128], index: 2, kind: input, shape index: {}]
  %s3 = inlined_call_operand.hbm [shape: f32[8,128], index: 3, kind: output, shape index: {}]
  %s4 = sld [smem:[#allocation0]]
  $region38: #{tpu_custom_call.1} parent=0
    _
  %s6 = ssub.s32 1, %s4
  %s7 = scalar_select 0, %s6, %s4
  $region1: #{tpu_custom_call.1} parent=0
    #allocation3 [shape = 'u8[4096]{0}', space=vmem, size = 0x1000, scoped, tag = 'input window, operand 0, single buffered']
    #allocation4 [shape = 's32[1]{0}', space=sflag, size = 0x4, scoped, tag = 'scoped memory for tpu_custom_call.1']
    #allocation5 [shape = 's32[1]{0}', space=sflag, size = 0x4, scoped, tag = 'scoped memory for tpu_custom_call.1']
    #allocation6 [shape = 'u8[65536]{0}', space=vmem, size = 0x10000, scoped, tag = 'input window, operand 1, single buffered']
    #allocation7 [shape = 's32[1]{0}', space=sflag, size = 0x4, scoped, tag = 'scoped memory for tpu_custom_call.1']
    #allocation8 [shape = 'u8[4096]{0}', space=vmem, size = 0x1000, scoped, tag = 'output window, operand 0, single buffered']
    %8 = vsyncpa [#allocation4], 0
    %9 = vsyncpa [#allocation7], 0
    %10 = vsyncpa [#allocation5], 0
    // Predicated region
    $region2: #{tpu_custom_call.1} parent=1 // pred_check
      _
    $region3: #{tpu_custom_call.1} parent=1 // pred_check_branch
      %12 = sbr.rel (0) target = $region5
    $region4: #{tpu_custom_call.1} parent=1 // pred_region
      %s14 = ssub.s32 128, 128
      %15 = vsyncadd [#allocation4], %s14
      %s17 = sshll.u32 [#allocation3], 4
      %s18 = int_to_ptr.vmem [resolvable:$true] %s17
      %20 = dma.hbm_to_vmem [thread:$0]  %s0, 128, %s18, [#allocation4]
    $region5: #{tpu_custom_call.1} parent=1 // pred_fallthru
      _
    // Predicated region
    $region6: #{tpu_custom_call.1} parent=1 // pred_check
      _
    $region7: #{tpu_custom_call.1} parent=1 // pred_check_branch
      %22 = sbr.rel (0) target = $region9
    $region8: #{tpu_custom_call.1} parent=1 // pred_region
      %s24 = ssub.s32 2048, 2048
      %25 = vsyncadd [#allocation7], %s24
      %s26 = sshll.u32 [#allocation6], 4
      %s27 = int_to_ptr.vmem [resolvable:$true] %s26
      %32 = dma.hbm_to_vmem [thread:$0]  %s1, 2048, %s27, [#allocation7], 128, 128, 8
    $region9: #{tpu_custom_call.1} parent=1 // pred_fallthru
      _
    // Predicated region
    $region10: #{tpu_custom_call.1} parent=1 // pred_check
      _
    $region11: #{tpu_custom_call.1} parent=1 // pred_check_branch
      %34 = sbr.rel (0) target = $region13
    $region12: #{tpu_custom_call.1} parent=1 // pred_region
      _
    $region13: #{tpu_custom_call.1} parent=1 // pred_fallthru
      _
    // Predicated region
    $region14: #{tpu_custom_call.1} parent=1 // pred_check
      _
    $region15: #{tpu_custom_call.1} parent=1 // pred_check_branch
      %36 = sbr.rel (0) target = $region17
    $region16: #{tpu_custom_call.1} parent=1 // pred_region
      %37 = dma.done [#allocation4], 128
    $region17: #{tpu_custom_call.1} parent=1 // pred_fallthru
      _
    // Predicated region
    $region18: #{tpu_custom_call.1} parent=1 // pred_check
      _
    $region19: #{tpu_custom_call.1} parent=1 // pred_check_branch
      %39 = sbr.rel (0) target = $region21
    $region20: #{tpu_custom_call.1} parent=1 // pred_region
      %40 = dma.done [#allocation7], 2048
    $region21: #{tpu_custom_call.1} parent=1 // pred_fallthru
      _
    %p42 = scmp.eq.s32.totalorder 0, 0
    // Predicated region
    $region22: #{tpu_custom_call.1} parent=1 // pred_check
      %p43 = pneg %p42
    $region23: #{tpu_custom_call.1} parent=1 // pred_check_branch
      %45 = sbr.rel (%p43) target = $region25
    $region24: #{tpu_custom_call.1} parent=1 // pred_region
      %46 = vst [vmem:[#allocation2] sm:$0xff] 0.0
    $region25: #{tpu_custom_call.1} parent=1 // pred_fallthru
      _
    %v47 = vld [vmem:[#allocation2] sm:$0xff]
    %v48 = vld [vmem:[#allocation3] sm:$0xff]
    %v49 = vpack.c.bf16 %v48, %v48
    %v50 = vld [vmem:[#allocation6] sm:$0xff]
    %v51 = vld [vmem:[#allocation6 + $0x8] sm:$0xff]
    %v52 = vld [vmem:[#allocation6 + $0x10] sm:$0xff]
    %v53 = vld [vmem:[#allocation6 + $0x18] sm:$0xff]
    %v54 = vld [vmem:[#allocation6 + $0x20] sm:$0xff]
    %v55 = vld [vmem:[#allocation6 + $0x28] sm:$0xff]
    %v56 = vld [vmem:[#allocation6 + $0x30] sm:$0xff]
    %v57 = vld [vmem:[#allocation6 + $0x38] sm:$0xff]
    %v58 = vld [vmem:[#allocation6 + $0x40] sm:$0xff]
    %v59 = vld [vmem:[#allocation6 + $0x48] sm:$0xff]
    %v60 = vld [vmem:[#allocation6 + $0x50] sm:$0xff]
    %v61 = vld [vmem:[#allocation6 + $0x58] sm:$0xff]
    %v62 = vld [vmem:[#allocation6 + $0x60] sm:$0xff]
    %v63 = vld [vmem:[#allocation6 + $0x68] sm:$0xff]
    %v64 = vld [vmem:[#allocation6 + $0x70] sm:$0xff]
    %v65 = vld [vmem:[#allocation6 + $0x78] sm:$0xff]
    %v66 = vpack.c.bf16 %v51, %v50
    %v67 = vpack.c.bf16 %v53, %v52
    %v68 = vpack.c.bf16 %v55, %v54
    %v69 = vpack.c.bf16 %v57, %v56
    %v70 = vpack.c.bf16 %v59, %v58
    %v71 = vpack.c.bf16 %v61, %v60
    %v72 = vpack.c.bf16 %v63, %v62
    %v73 = vpack.c.bf16 %v65, %v64
    %74 = vmatprep.subr.bf16.mxu0 0
    %75 = vmatpush1.bf16.msra.mxu0 %v73
    %76 = vmatprep.subr.bf16.mxu0 0
    %77 = vmatpush1.bf16.msra.mxu0 %v72
    %78 = vmatprep.subr.bf16.mxu0 0
    %79 = vmatpush1.bf16.msra.mxu0 %v71
    %80 = vmatprep.subr.bf16.mxu0 0
    %81 = vmatpush1.bf16.msra.mxu0 %v70
    %82 = vmatprep.subr.bf16.mxu0 0
    %83 = vmatpush1.bf16.msra.mxu0 %v69
    %84 = vmatprep.subr.bf16.mxu0 0
    %85 = vmatpush1.bf16.msra.mxu0 %v68
    %86 = vmatprep.subr.bf16.mxu0 0
    %87 = vmatpush1.bf16.msra.mxu0 %v67
    %88 = vmatprep.subr.bf16.mxu0 0
    %89 = vmatpush1.bf16.msra.mxu0 %v66
    %90 = vmatprep.subr.bf16.mxu0 0
    %91 = vmatpush2.bf16.msra.mxu0 0
    %92 = vmatprep.subr.bf16.mxu0 0
    %93 = vmatpush2.bf16.msra.mxu0 0
    %94 = vmatprep.subr.bf16.mxu0 0
    %95 = vmatpush2.bf16.msra.mxu0 0
    %96 = vmatprep.subr.bf16.mxu0 0
    %97 = vmatpush2.bf16.msra.mxu0 0
    %98 = vmatprep.subr.bf16.mxu0 0
    %99 = vmatpush2.bf16.msra.mxu0 0
    %100 = vmatprep.subr.bf16.mxu0 0
    %101 = vmatpush2.bf16.msra.mxu0 0
    %102 = vmatprep.subr.bf16.mxu0 0
    %103 = vmatpush2.bf16.msra.mxu0 0
    %104 = vmatprep.subr.bf16.mxu0 0
    %105 = vmatpush2.bf16.msra.mxu0 0
    %106 = vmatprep.mubr.bf16.mxu0 0
    %107 = vmatmul.mubr.bf16.gmra.mxu0 %v49
    %v108 = vpop.f32.mrf.mxu0
    %v109 = vadd.f32 0.0, %v108
    %v110 = vpop.f32.mrf.mxu0
    %v111 = vpop.f32.mrf.mxu0
    %v112 = vpop.f32.mrf.mxu0
    %113 = vdwg.mxu0
    %v114 = vadd.f32 %v47, %v109
    %115 = vst [vmem:[#allocation2] sm:$0xff] %v114
    // Predicated region
    $region26: #{tpu_custom_call.1} parent=1 // pred_check
      %p116 = pneg %p42
    $region27: #{tpu_custom_call.1} parent=1 // pred_check_branch
      %118 = sbr.rel (%p116) target = $region29
    $region28: #{tpu_custom_call.1} parent=1 // pred_region
      %v119 = vld [vmem:[#allocation2] sm:$0xff]
      %v120 = vld [vmem:[%s2] sm:$0x1]
      %v122 = vlaneseq
      %v123 = vshrl.u32 %v122, 7
      %v124 = vsub.s32 0, %v123
      %v125 = vrot.slane %v120, %v124
      %v127 = vadd.f32 %v119, %v125
      %128 = vst [vmem:[#allocation8] sm:$0xff] %v127
    $region29: #{tpu_custom_call.1} parent=1 // pred_fallthru
      _
    // Predicated region
    $region30: #{tpu_custom_call.1} parent=1 // pred_check
      _
    $region31: #{tpu_custom_call.1} parent=1 // pred_check_branch
      %130 = sbr.rel (0) target = $region33
    $region32: #{tpu_custom_call.1} parent=1 // pred_region
      %s132 = ssub.s32 128, 128
      %133 = vsyncadd [#allocation5], %s132
      %s135 = sshll.u32 [#allocation8], 4
      %s136 = int_to_ptr.vmem [resolvable:$true] %s135
      %138 = dma.vmem_to_hbm [thread:$0]  %s136, 128, %s3, [#allocation5]
    $region33: #{tpu_custom_call.1} parent=1 // pred_fallthru
      _
    // Predicated region
    $region34: #{tpu_custom_call.1} parent=1 // pred_check
      _
    $region35: #{tpu_custom_call.1} parent=1 // pred_check_branch
      %140 = sbr.rel (0) target = $region37
    $region36: #{tpu_custom_call.1} parent=1 // pred_region
      %141 = dma.done [#allocation5], 128
    $region37: #{tpu_custom_call.1} parent=1 // pred_fallthru
      _
    %142 = vsyncpa [#allocation4], 1
    %143 = vsyncpa [#allocation7], 1
    %144 = vsyncpa [#allocation5], 1

</llo_original>
